<compile_context>
chip_gen: v5e
topology: v5e:2x2
jax: 0.10.0
libtpu: 0.0.40
codegen_flags: <defaults>
</compile_context>

<pallas_src>
import functools

import jax
import jax.numpy as jnp
from jax.experimental import pallas as pl
from jax.experimental.pallas import tpu as pltpu


# ----------------------------------------------------------------------------
# Kernel A: Linear + ReLU projection + masked pooling, streamed over S,
# split over output-H column blocks.
# ----------------------------------------------------------------------------
def _proj_pool_kernel(enc_ref, dec_ref, em_ref, dm_ref, w_ref, b_ref,
                      sum_doc_ref, sum_abs_ref, *, dec_scale, fuse_streams):
    s = pl.program_id(1)  # sequence-reduction step (innermost, "arbitrary")

    @pl.when(s == 0)
    def _init():
        # The output blocks are revisited across the S axis (their block index
        # only depends on the h axis), so they double as resident f32
        # accumulators -- no scratch buffers needed.
        sum_doc_ref[...] = jnp.zeros_like(sum_doc_ref)
        sum_abs_ref[...] = jnp.zeros_like(sum_abs_ref)

    B, St, H = enc_ref.shape
    Ht = w_ref.shape[1]
    BM = B * St

    bias = b_ref[...].astype(jnp.float32)            # [1, Ht]
    em = em_ref[...].astype(jnp.float32)             # [B, St, 1]
    dm = dm_ref[...].astype(jnp.float32)

    enc2 = enc_ref[...].reshape(BM, H)               # compute dtype (bf16)
    dec2 = dec_ref[...].reshape(BM, H)
    w = w_ref[...]

    if fuse_streams:
        # Small-M case: one MXU call with M = 2*B*St so the systolic array is
        # not underfilled; both f32 results are live simultaneously but the
        # tiles are small by construction.
        x2 = jnp.concatenate([enc2, dec2], axis=0)
        y = jnp.dot(x2, w, preferred_element_type=jnp.float32)   # [2*BM, Ht]
        proj_enc = jnp.maximum(y[:BM] + bias, 0.0).reshape(B, St, Ht)
        proj_dec = jnp.maximum(y[BM:] * dec_scale + bias, 0.0).reshape(B, St, Ht)
        sum_doc_ref[...] += jnp.sum(proj_enc * em, axis=1)
        sum_abs_ref[...] += jnp.sum(proj_dec * dm, axis=1)
    else:
        # Interleaved streams: only one [B, St, Ht] f32 intermediate is live
        # at a time, halving peak VMEM temporaries.
        proj_enc = jnp.maximum(
            jnp.dot(enc2, w, preferred_element_type=jnp.float32) + bias,
            0.0).reshape(B, St, Ht)
        sum_doc_ref[...] += jnp.sum(proj_enc * em, axis=1)
        proj_dec = jnp.maximum(
            jnp.dot(dec2, w, preferred_element_type=jnp.float32) * dec_scale
            + bias, 0.0).reshape(B, St, Ht)
        sum_abs_ref[...] += jnp.sum(proj_dec * dm, axis=1)


# ----------------------------------------------------------------------------
# Kernel B: masked mean -> cosine similarity -> contrastive cross-entropy.
# ----------------------------------------------------------------------------
def _sim_ce_kernel(sum_doc_ref, sum_abs_ref, len_doc_ref, len_abs_ref,
                   sim_ref, loss_ref, *, inv_tau):
    # Masked mean.  Guard fully-masked rows (reference would produce NaN);
    # the approximate reciprocal is safe because a per-row positive scale
    # cancels exactly in the cosine normalization below.
    inv_el = pl.reciprocal(jnp.maximum(len_doc_ref[...], 1.0), approx=True)
    inv_dl = pl.reciprocal(jnp.maximum(len_abs_ref[...], 1.0), approx=True)
    avg_doc = sum_doc_ref[...] * inv_el                        # [B, H]
    avg_abs = sum_abs_ref[...] * inv_dl

    # Cosine similarity: per-row rsqrt normalization (EUP) + a single
    # [B,H] x [H,B] MXU dot.  No K=1 norm matmul, no [B,B] divide.
    inv_nd = jax.lax.rsqrt(jnp.maximum(
        jnp.sum(avg_doc * avg_doc, axis=-1, keepdims=True), 1e-16))
    inv_na = jax.lax.rsqrt(jnp.maximum(
        jnp.sum(avg_abs * avg_abs, axis=-1, keepdims=True), 1e-16))
    sim = jax.lax.dot_general(
        avg_doc * inv_nd, avg_abs * inv_na,
        (((1,), (1,)), ((), ())), preferred_element_type=jnp.float32)
    sim_ref[...] = sim

    # ---- contrastive cross-entropy, labels = arange(B) ----
    # TODO(synk): the torch code appends adv_sim / pos_sim columns that need
    # autograd through the full HF model; only the sim-matrix CE term is here.
    Bq = sim.shape[0]
    logits = sim * inv_tau
    row_max = jnp.max(logits, axis=-1, keepdims=True)
    lse = jnp.log(jnp.sum(jnp.exp(logits - row_max), axis=-1,
                          keepdims=True)) + row_max
    row_i = jax.lax.broadcasted_iota(jnp.int32, (Bq, Bq), 0)
    col_j = jax.lax.broadcasted_iota(jnp.int32, (Bq, Bq), 1)
    diag = jnp.sum(jnp.where(row_i == col_j, logits, 0.0),
                   axis=-1, keepdims=True)                      # logits[i, i]
    loss_ref[0, 0] = jnp.mean(lse - diag)


# ----------------------------------------------------------------------------
# Tiling helpers (generation-aware VMEM budgeting).
# ----------------------------------------------------------------------------
def _vmem_limit_bytes():
    """~75% of the chip's physical per-core VMEM (v5e/v6e: 128 MiB, v7x: 64)."""
    cap = 64 << 20                                  # safe default (v7x-sized)
    try:
        cap = int(pltpu.get_tpu_info().vmem_capacity_bytes) or cap
    except Exception:
        pass
    return int(min(cap * 3 // 4, 100 << 20))


def _num_tensorcores():
    try:
        return int(getattr(pltpu.get_tpu_info(), "num_cores", 1))
    except Exception:
        return 1


def _pick_s_tile(B, S, H, h_tile, act_bytes, s_align, vmem_limit):
    """Largest s_align-aligned divisor of S whose working set fits in VMEM.

    Budgets everything that actually lives in VMEM: the double-buffered
    enc/dec (+mask) input tiles, the f32 projection temporaries, and the
    resident W / bias / pooled-sum output blocks.
    """
    fixed = (2 * H * h_tile * act_bytes        # W block, double-buffered
             + 2 * 1 * h_tile * 4              # bias block
             + 2 * 2 * B * h_tile * 4)         # pooled-sum output blocks
    per_row = (2 * 2 * B * H * act_bytes       # enc + dec tiles, 2x buffered
               + 2 * 2 * B * act_bytes         # mask tiles
               + 4 * B * h_tile * 4)           # f32 projection temporaries
    budget = max(int(vmem_limit * 0.85) - fixed, per_row * s_align)
    max_rows = max(budget // per_row, s_align)

    cands = [t for t in range(s_align, S + 1, s_align)
             if S % t == 0 and t <= max_rows]
    if not cands:
        cands = [t for t in range(s_align, S + 1, s_align) if S % t == 0]
    if not cands:
        return S                               # S < s_align: single full block
    # Prefer an MXU-friendly M (B * s_tile multiple of 256) when it does not
    # cost more than 2x in tile size.
    aligned = [t for t in cands if (B * t) % 256 == 0]
    if aligned and 2 * max(aligned) >= max(cands):
        return max(aligned)
    return max(cands)


# ----------------------------------------------------------------------------
# Wrapper
# ----------------------------------------------------------------------------
def cons_cl_contrastive(enc_h, dec_h, enc_mask, dec_mask, w, b, *, tau=0.1,
                        s_tile=None, h_tile=None, compute_dtype=jnp.bfloat16):
    """Returns (sim_matrix [B,B] f32, contrastive cross-entropy loss scalar)."""
    B, S, H = enc_h.shape
    cd = jnp.dtype(compute_dtype)
    act_bytes = cd.itemsize
    s_align = {1: 32, 2: 16}.get(act_bytes, 8)      # sublane packing per dtype

    # bf16 MXU operands (f32 accumulation): 2-4x MXU throughput on v6e/v7x and
    # half the enc/dec HBM + VMEM bytes.  Single resident W: the decoder's
    # d_model**-0.5 scale is applied to the f32 matmul result in-kernel.
    enc_c = enc_h.astype(cd)
    dec_c = dec_h.astype(cd)
    w_c = jnp.asarray(w).astype(cd)
    b_f32 = jnp.asarray(b).astype(jnp.float32).reshape(1, H)
    dec_scale = float(H) ** -0.5

    # Masks stay narrow ([B,S,1] in the compute dtype): 2x fewer mask-DMA
    # bytes than f32; cast to f32 inside the kernel (0/1 exact in bf16).
    em = enc_mask.astype(cd).reshape(B, S, 1)
    dm = dec_mask.astype(cd).reshape(B, S, 1)
    # Mask lengths are a trivial [B,1] reduction, done once in the wrapper.
    len_doc = jnp.sum(enc_mask.astype(jnp.float32), axis=1, keepdims=True)
    len_abs = jnp.sum(dec_mask.astype(jnp.float32), axis=1, keepdims=True)

    vmem_limit = _vmem_limit_bytes()

    if h_tile is None:
        h_tile = H
        # On 2-TensorCore chips (v7x) split the projection's output columns
        # into two "parallel" blocks so both cores run the GEMM+pooling phase.
        if _num_tensorcores() >= 2 and H % 256 == 0 and H >= 512:
            h_tile = H // 2
    assert H % h_tile == 0 and (h_tile % 128 == 0 or h_tile == H), (H, h_tile)
    n_h = H // h_tile

    if s_tile is None:
        s_tile = _pick_s_tile(B, S, H, h_tile, act_bytes, s_align, vmem_limit)
    assert S % s_tile == 0 and (s_tile % 8 == 0 or s_tile == S), (S, s_tile)
    n_s = S // s_tile

    # Fuse both streams into one MXU call when M would otherwise underfill the
    # systolic array; otherwise interleave them to halve f32 temporaries.
    fuse_streams = (B * s_tile < 512) and ((B * s_tile) % s_align == 0)

    kernel = functools.partial(_proj_pool_kernel, dec_scale=dec_scale,
                               fuse_streams=fuse_streams)

    flops = 4 * B * S * H * H                          # two GEMMs
    bytes_accessed = (n_h * (enc_c.size + dec_c.size + em.size + dm.size)
                      * act_bytes
                      + w_c.size * act_bytes + b_f32.size * 4
                      + 2 * B * H * 4)

    grid_spec = pltpu.PrefetchScalarGridSpec(
        num_scalar_prefetch=0,
        grid=(n_h, n_s),
        in_specs=[
            pl.BlockSpec((B, s_tile, H), lambda h, s: (0, s, 0)),   # enc tile
            pl.BlockSpec((B, s_tile, H), lambda h, s: (0, s, 0)),   # dec tile
            pl.BlockSpec((B, s_tile, 1), lambda h, s: (0, s, 0)),   # enc mask
            pl.BlockSpec((B, s_tile, 1), lambda h, s: (0, s, 0)),   # dec mask
            pl.BlockSpec((H, h_tile), lambda h, s: (0, h)),         # W block
            pl.BlockSpec((1, h_tile), lambda h, s: (0, h)),         # bias
        ],
        out_specs=(
            pl.BlockSpec((B, h_tile), lambda h, s: (0, h)),         # enc sums
            pl.BlockSpec((B, h_tile), lambda h, s: (0, h)),         # dec sums
        ),
    )

    sum_doc, sum_abs = pl.pallas_call(
        kernel,
        out_shape=(jax.ShapeDtypeStruct((B, H), jnp.float32),
                   jax.ShapeDtypeStruct((B, H), jnp.float32)),
        grid_spec=grid_spec,
        compiler_params=pltpu.CompilerParams(
            dimension_semantics=("parallel", "arbitrary"),
            vmem_limit_bytes=int(vmem_limit)),
        cost_estimate=pl.CostEstimate(
            flops=int(flops), transcendentals=0,
            bytes_accessed=int(bytes_accessed)),
    )(enc_c, dec_c, em, dm, w_c, b_f32)

    # Tiny finalize kernel: cosine similarity + contrastive CE (scalar in SMEM).
    sim, loss = pl.pallas_call(
        functools.partial(_sim_ce_kernel, inv_tau=1.0 / float(tau)),
        out_shape=(jax.ShapeDtypeStruct((B, B), jnp.float32),
                   jax.ShapeDtypeStruct((1, 1), jnp.float32)),
        in_specs=[pl.BlockSpec(memory_space=pltpu.MemorySpace.VMEM)] * 4,
        out_specs=(pl.BlockSpec(memory_space=pltpu.MemorySpace.VMEM),
                   pl.BlockSpec(memory_space=pltpu.MemorySpace.SMEM)),
    )(sum_doc, sum_abs, len_doc, len_abs)
    return sim, loss[0, 0]


# ----------------------------------------------------------------------------
# Pure-JAX reference (mirrors the torch semantics; compute_dtype selects the
# matmul operand precision so the check is apples-to-apples with the kernel).
# ----------------------------------------------------------------------------
def _reference(enc_h, dec_h, enc_mask, dec_mask, w, b, tau=0.1,
               compute_dtype=jnp.float32):
    B, S, H = enc_h.shape
    cd = jnp.dtype(compute_dtype)
    w_c = jnp.asarray(w).astype(cd)
    b_f = jnp.asarray(b).astype(jnp.float32).reshape(1, H)
    scale = float(H) ** -0.5                       # s*(x@W) == (s*x)@W exactly
    pe = jnp.maximum(
        jnp.dot(enc_h.astype(cd).reshape(B * S, H), w_c,
                preferred_element_type=jnp.float32) + b_f, 0.0).reshape(B, S, H)
    pd = jnp.maximum(
        jnp.dot(dec_h.astype(cd).reshape(B * S, H), w_c,
                preferred_element_type=jnp.float32) * scale + b_f,
        0.0).reshape(B, S, H)
    em = enc_mask.astype(jnp.float32)
    dm = dec_mask.astype(jnp.float32)
    avg_doc = (pe * em[:, :, None]).sum(1) / em.sum(1, keepdims=True)
    avg_abs = (pd * dm[:, :, None]).sum(1) / dm.sum(1, keepdims=True)
    dots = avg_doc @ avg_abs.T
    nrm = jnp.maximum(
        jnp.linalg.norm(avg_doc, axis=-1, keepdims=True)
        * jnp.linalg.norm(avg_abs, axis=-1, keepdims=True).T, 1e-8)
    sim = dots / nrm
    logits = sim / tau
    lse = jax.scipy.special.logsumexp(logits, axis=-1)
    loss = jnp.mean(lse - jnp.diag(logits))
    return sim, loss


if __name__ == "__main__":
    B, S, H = 2, 32, 256
    key = jax.random.PRNGKey(0)
    k_enc, k_dec, k_w, k_b = jax.random.split(key, 4)

    enc_h = jax.random.normal(k_enc, (B, S, H), dtype=jnp.float32)
    dec_h = jax.random.normal(k_dec, (B, S, H), dtype=jnp.float32)
    # The module's get_mask_from_input_ids produces all-ones masks (its
    # `!= pad or != -100` condition is always true); reproduce that.
    enc_mask = jnp.ones((B, S), dtype=jnp.int32)
    dec_mask = jnp.ones((B, S), dtype=jnp.int32)

    # nn.Linear(H, H) init, deterministic; stored as [H_in, H_out]
    bound = 1.0 / (H ** 0.5)
    w = jax.random.uniform(k_w, (H, H), jnp.float32, -bound, bound)
    b = jax.random.uniform(k_b, (1, H), jnp.float32, -bound, bound)

    sim_ref, loss_ref = _reference(enc_h, dec_h, enc_mask, dec_mask, w, b,
                                   tau=0.1, compute_dtype=jnp.bfloat16)

    # 1) Auto-tiled configuration (VMEM-budgeted tile picker).
    sim_a, loss_a = cons_cl_contrastive(enc_h, dec_h, enc_mask, dec_mask,
                                        w, b, tau=0.1)
    jax.block_until_ready((sim_a, loss_a))
    assert jnp.allclose(sim_a, sim_ref, atol=2e-3, rtol=2e-3), (sim_a, sim_ref)
    assert jnp.allclose(loss_a, loss_ref, atol=2e-3), (loss_a, loss_ref)

    # 2) Forced multi-block configuration: s_tile=16 -> 2-step S reduction,
    #    h_tile=128 -> 2 "parallel" output-column blocks.
    sim_b, loss_b = cons_cl_contrastive(enc_h, dec_h, enc_mask, dec_mask,
                                        w, b, tau=0.1, s_tile=16, h_tile=128)
    jax.block_until_ready((sim_b, loss_b))
    assert jnp.allclose(sim_b, sim_ref, atol=2e-3, rtol=2e-3), (sim_b, sim_ref)
    assert jnp.allclose(loss_b, loss_ref, atol=2e-3), (loss_b, loss_ref)

    print("KERNEL_OK")
</pallas_src>

<mosaic_0001>
module attributes {stable_mosaic.version = 11 : i64} {
  func.func @_proj_pool_kernel(%arg0: i32, %arg1: i32, %arg2: memref<2x32x256xbf16, #tpu.memory_space<vmem>>, %arg3: memref<2x32x256xbf16, #tpu.memory_space<vmem>>, %arg4: memref<2x32x1xbf16, #tpu.memory_space<vmem>>, %arg5: memref<2x32x1xbf16, #tpu.memory_space<vmem>>, %arg6: memref<256x256xbf16, #tpu.memory_space<vmem>>, %arg7: memref<1x256xf32, #tpu.memory_space<vmem>>, %arg8: memref<2x256xf32, #tpu.memory_space<vmem>>, %arg9: memref<2x256xf32, #tpu.memory_space<vmem>>) attributes {dimension_semantics = [#tpu.dimension_semantics<parallel>, #tpu.dimension_semantics<arbitrary>], iteration_bounds = array<i64: 1, 1>, scalar_prefetch = 0 : i64, scratch_operands = 0 : i64, tpu.core_type = #tpu.core_type<tc>, window_params = [{transform_indices = @transform_0, window_bounds = array<i64: 2, 32, 256>}, {transform_indices = @transform_1, window_bounds = array<i64: 2, 32, 256>}, {transform_indices = @transform_2, window_bounds = array<i64: 2, 32, 1>}, {transform_indices = @transform_3, window_bounds = array<i64: 2, 32, 1>}, {transform_indices = @transform_4, window_bounds = array<i64: 256, 256>}, {transform_indices = @transform_5, window_bounds = array<i64: 1, 256>}, {transform_indices = @transform_6, window_bounds = array<i64: 2, 256>}, {transform_indices = @transform_7, window_bounds = array<i64: 2, 256>}]} {
    %c0_i32 = arith.constant 0 : i32
    %0 = arith.cmpi eq, %arg1, %c0_i32 : i32
    %1 = arith.extui %0 : i1 to i32
    %c0_i32_0 = arith.constant 0 : i32
    %2 = arith.cmpi ne, %1, %c0_i32_0 : i32
    scf.if %2 {
      %cst_29 = arith.constant 0.000000e+00 : f32
      %41 = vector.broadcast %cst_29 : f32 to vector<2x256xf32>
      %c0_30 = arith.constant 0 : index
      %c0_31 = arith.constant 0 : index
      %42 = vector.load %arg8[%c0_30, %c0_31] : memref<2x256xf32, #tpu.memory_space<vmem>>, vector<2x256xf32>
      tpu.vector_store %arg8[%c0_30, %c0_31], %41 {strides = array<i32>} : memref<2x256xf32, #tpu.memory_space<vmem>>, vector<2x256xf32>,
      %cst_32 = arith.constant 0.000000e+00 : f32
      %43 = vector.broadcast %cst_32 : f32 to vector<2x256xf32>
      %c0_33 = arith.constant 0 : index
      %c0_34 = arith.constant 0 : index
      %44 = vector.load %arg9[%c0_33, %c0_34] : memref<2x256xf32, #tpu.memory_space<vmem>>, vector<2x256xf32>
      tpu.vector_store %arg9[%c0_33, %c0_34], %43 {strides = array<i32>} : memref<2x256xf32, #tpu.memory_space<vmem>>, vector<2x256xf32>,
    } else {
    }
    %c0 = arith.constant 0 : index
    %c0_1 = arith.constant 0 : index
    %3 = vector.load %arg7[%c0, %c0_1] : memref<1x256xf32, #tpu.memory_space<vmem>>, vector<1x256xf32>
    %c0_2 = arith.constant 0 : index
    %c0_3 = arith.constant 0 : index
    %c0_4 = arith.constant 0 : index
    %4 = vector.load %arg4[%c0_2, %c0_3, %c0_4] : memref<2x32x1xbf16, #tpu.memory_space<vmem>>, vector<2x32x1xbf16>
    %5 = arith.extf %4 : vector<2x32x1xbf16> to vector<2x32x1xf32>
    %c0_5 = arith.constant 0 : index
    %c0_6 = arith.constant 0 : index
    %c0_7 = arith.constant 0 : index
    %6 = vector.load %arg5[%c0_5, %c0_6, %c0_7] : memref<2x32x1xbf16, #tpu.memory_space<vmem>>, vector<2x32x1xbf16>
    %7 = arith.extf %6 : vector<2x32x1xbf16> to vector<2x32x1xf32>
    %c0_8 = arith.constant 0 : index
    %c0_9 = arith.constant 0 : index
    %c0_10 = arith.constant 0 : index
    %8 = vector.load %arg2[%c0_8, %c0_9, %c0_10] : memref<2x32x256xbf16, #tpu.memory_space<vmem>>, vector<2x32x256xbf16>
    %9 = vector.shape_cast %8 : vector<2x32x256xbf16> to vector<64x256xbf16>
    %c0_11 = arith.constant 0 : index
    %c0_12 = arith.constant 0 : index
    %c0_13 = arith.constant 0 : index
    %10 = vector.load %arg3[%c0_11, %c0_12, %c0_13] : memref<2x32x256xbf16, #tpu.memory_space<vmem>>, vector<2x32x256xbf16>
    %11 = vector.shape_cast %10 : vector<2x32x256xbf16> to vector<64x256xbf16>
    %c0_14 = arith.constant 0 : index
    %c0_15 = arith.constant 0 : index
    %12 = vector.load %arg6[%c0_14, %c0_15] : memref<256x256xbf16, #tpu.memory_space<vmem>>, vector<256x256xbf16>
    %13 = tpu.concatenate %9, %11 in 0 : vector<64x256xbf16>, vector<64x256xbf16> -> vector<128x256xbf16>
    %cst = arith.constant dense<0.000000e+00> : vector<128x256xf32>
    %14 = tpu.matmul %13, %12, %cst {dimension_numbers = #tpu.dot_dimension_numbers<[1], [0], [0], [1], [0, 0, 1, 1], [], []>} : vector<128x256xbf16>, vector<256x256xbf16>, vector<128x256xf32> -> vector<128x256xf32>
    %15 = vector.extract_strided_slice %14 {offsets = [0, 0], sizes = [64, 256], strides = [1, 1]} : vector<128x256xf32> to vector<64x256xf32>
    %16 = vector.broadcast %3 : vector<1x256xf32> to vector<64x256xf32>
    %17 = arith.addf %15, %16 : vector<64x256xf32>
    %cst_16 = arith.constant 0.000000e+00 : f32
    %18 = vector.broadcast %cst_16 : f32 to vector<64x256xf32>
    %19 = arith.maximumf %17, %18 : vector<64x256xf32>
    %20 = vector.shape_cast %19 : vector<64x256xf32> to vector<2x32x256xf32>
    %21 = vector.extract_strided_slice %14 {offsets = [64, 0], sizes = [64, 256], strides = [1, 1]} : vector<128x256xf32> to vector<64x256xf32>
    %cst_17 = arith.constant 6.250000e-02 : f32
    %22 = vector.broadcast %cst_17 : f32 to vector<64x256xf32>
    %23 = arith.mulf %21, %22 : vector<64x256xf32>
    %24 = vector.broadcast %3 : vector<1x256xf32> to vector<64x256xf32>
    %25 = arith.addf %23, %24 : vector<64x256xf32>
    %cst_18 = arith.constant 0.000000e+00 : f32
    %26 = vector.broadcast %cst_18 : f32 to vector<64x256xf32>
    %27 = arith.maximumf %25, %26 : vector<64x256xf32>
    %28 = vector.shape_cast %27 : vector<64x256xf32> to vector<2x32x256xf32>
    %c0_19 = arith.constant 0 : index
    %c0_20 = arith.constant 0 : index
    %29 = vector.load %arg8[%c0_19, %c0_20] : memref<2x256xf32, #tpu.memory_space<vmem>>, vector<2x256xf32>
    %30 = vector.broadcast %5 : vector<2x32x1xf32> to vector<2x32x256xf32>
    %31 = arith.mulf %20, %30 : vector<2x32x256xf32>
    %cst_21 = arith.constant dense<0.000000e+00> : vector<2x256xf32>
    %32 = vector.multi_reduction <add>, %31, %cst_21 [1] : vector<2x32x256xf32> to vector<2x256xf32>
    %33 = arith.addf %29, %32 : vector<2x256xf32>
    %c0_22 = arith.constant 0 : index
    %c0_23 = arith.constant 0 : index
    %34 = vector.load %arg8[%c0_22, %c0_23] : memref<2x256xf32, #tpu.memory_space<vmem>>, vector<2x256xf32>
    tpu.vector_store %arg8[%c0_22, %c0_23], %33 {strides = array<i32>} : memref<2x256xf32, #tpu.memory_space<vmem>>, vector<2x256xf32>,
    %c0_24 = arith.constant 0 : index
    %c0_25 = arith.constant 0 : index
    %35 = vector.load %arg9[%c0_24, %c0_25] : memref<2x256xf32, #tpu.memory_space<vmem>>, vector<2x256xf32>
    %36 = vector.broadcast %7 : vector<2x32x1xf32> to vector<2x32x256xf32>
    %37 = arith.mulf %28, %36 : vector<2x32x256xf32>
    %cst_26 = arith.constant dense<0.000000e+00> : vector<2x256xf32>
    %38 = vector.multi_reduction <add>, %37, %cst_26 [1] : vector<2x32x256xf32> to vector<2x256xf32>
    %39 = arith.addf %35, %38 : vector<2x256xf32>
    %c0_27 = arith.constant 0 : index
    %c0_28 = arith.constant 0 : index
    %40 = vector.load %arg9[%c0_27, %c0_28] : memref<2x256xf32, #tpu.memory_space<vmem>>, vector<2x256xf32>
    tpu.vector_store %arg9[%c0_27, %c0_28], %39 {strides = array<i32>} : memref<2x256xf32, #tpu.memory_space<vmem>>, vector<2x256xf32>,
    return
  }
  func.func @transform_0(%arg0: i32, %arg1: i32) -> (i32, i32, i32) {
    %c0_i32 = arith.constant 0 : i32
    %c0_i32_0 = arith.constant 0 : i32
    %c0_i32_1 = arith.constant 0 : i32
    return %c0_i32, %arg1, %c0_i32_0 : i32, i32, i32
  }
  func.func @transform_1(%arg0: i32, %arg1: i32) -> (i32, i32, i32) {
    %c0_i32 = arith.constant 0 : i32
    %c0_i32_0 = arith.constant 0 : i32
    %c0_i32_1 = arith.constant 0 : i32
    return %c0_i32, %arg1, %c0_i32_0 : i32, i32, i32
  }
  func.func @transform_2(%arg0: i32, %arg1: i32) -> (i32, i32, i32) {
    %c0_i32 = arith.constant 0 : i32
    %c0_i32_0 = arith.constant 0 : i32
    %c0_i32_1 = arith.constant 0 : i32
    return %c0_i32, %arg1, %c0_i32_0 : i32, i32, i32
  }
  func.func @transform_3(%arg0: i32, %arg1: i32) -> (i32, i32, i32) {
    %c0_i32 = arith.constant 0 : i32
    %c0_i32_0 = arith.constant 0 : i32
    %c0_i32_1 = arith.constant 0 : i32
    return %c0_i32, %arg1, %c0_i32_0 : i32, i32, i32
  }
  func.func @transform_4(%arg0: i32, %arg1: i32) -> (i32, i32) {
    %c0_i32 = arith.constant 0 : i32
    %c0_i32_0 = arith.constant 0 : i32
    return %c0_i32, %arg0 : i32, i32
  }
  func.func @transform_5(%arg0: i32, %arg1: i32) -> (i32, i32) {
    %c0_i32 = arith.constant 0 : i32
    %c0_i32_0 = arith.constant 0 : i32
    return %c0_i32, %arg0 : i32, i32
  }
  func.func @transform_6(%arg0: i32, %arg1: i32) -> (i32, i32) {
    %c0_i32 = arith.constant 0 : i32
    %c0_i32_0 = arith.constant 0 : i32
    return %c0_i32, %arg0 : i32, i32
  }
  func.func @transform_7(%arg0: i32, %arg1: i32) -> (i32, i32) {
    %c0_i32 = arith.constant 0 : i32
    %c0_i32_0 = arith.constant 0 : i32
    return %c0_i32, %arg0 : i32, i32
  }
}

</mosaic_0001>

<llo_original>
// kernel: tpu_custom_call.1
$region0: #{tpu_custom_call.1}
  #allocation0 [shape = 'u32[]', space=smem, size = 0x4, offset = 0x4, fixed_abs, tag = 'smem constant byte address 0x4 - core index']
  #allocation1 [shape = 'u32[72,128]{1,0:T(1,128)}', space=vmem, size = 0x9000, scoped, tag = 'internal scratch']
  %s0 = inlined_call_operand.vmem [shape: bf16[2,32,256], index: 0, kind: input, shape index: {}]
  %s1 = inlined_call_operand.hbm [shape: bf16[2,32,256], index: 1, kind: input, shape index: {}]
  %s2 = inlined_call_operand.vmem [shape: bf16[2,32,1], index: 2, kind: input, shape index: {}]
  %s3 = inlined_call_operand.vmem [shape: bf16[2,32,1], index: 3, kind: input, shape index: {}]
  %s4 = inlined_call_operand.hbm [shape: bf16[256,256], index: 4, kind: input, shape index: {}]
  %s5 = inlined_call_operand.vmem [shape: f32[1,256], index: 5, kind: input, shape index: {}]
  %s6 = inlined_call_operand.hbm [shape: f32[2,256], index: 6, kind: output, shape index: {0}]
  %s7 = inlined_call_operand.hbm [shape: f32[2,256], index: 7, kind: output, shape index: {1}]
  %8 = xla_tuple %s6, %s7
  %s9 = sld [smem:[#allocation0]]
  $region54: #{tpu_custom_call.1} parent=0
    _
  %s11 = ssub.s32 1, %s9
  %s12 = scalar_select 0, %s11, %s9
  $region1: #{tpu_custom_call.1} parent=0
    #allocation2 [shape = 'u8[32768]{0}', space=vmem, size = 0x8000, scoped, tag = 'input window, operand 1, single buffered']
    #allocation3 [shape = 's32[1]{0}', space=sflag, size = 0x4, scoped, tag = 'scoped memory for tpu_custom_call.1']
    #allocation4 [shape = 's32[1]{0}', space=sflag, size = 0x4, scoped, tag = 'scoped memory for tpu_custom_call.1']
    #allocation5 [shape = 'u8[131072]{0}', space=vmem, size = 0x20000, scoped, tag = 'input window, operand 4, single buffered']
    #allocation6 [shape = 's32[1]{0}', space=sflag, size = 0x4, scoped, tag = 'scoped memory for tpu_custom_call.1']
    #allocation7 [shape = 'u8[2048]{0}', space=vmem, size = 0x800, scoped, tag = 'output window, operand 0, single buffered']
    #allocation8 [shape = 'u8[2048]{0}', space=vmem, size = 0x800, scoped, tag = 'output window, operand 1, single buffered']
    #allocation9 [shape = 's32[1]{0}', space=sflag, size = 0x4, scoped, tag = 'scoped memory for tpu_custom_call.1']
    %13 = vsyncpa [#allocation3], 0
    %14 = vsyncpa [#allocation6], 0
    %15 = vsyncpa [#allocation4], 0
    %16 = vsyncpa [#allocation9], 0
    // Predicated region
    $region2: #{tpu_custom_call.1} parent=1 // pred_check
      _
    $region3: #{tpu_custom_call.1} parent=1 // pred_check_branch
      %18 = sbr.rel (0) target = $region5
    $region4: #{tpu_custom_call.1} parent=1 // pred_region
      _
    $region5: #{tpu_custom_call.1} parent=1 // pred_fallthru
      _
    // Predicated region
    $region6: #{tpu_custom_call.1} parent=1 // pred_check
      _
    $region7: #{tpu_custom_call.1} parent=1 // pred_check_branch
      %20 = sbr.rel (0) target = $region9
    $region8: #{tpu_custom_call.1} parent=1 // pred_region
      %22 = vsyncadd [#allocation3], 0
      %s23 = sshll.u32 %s1, 4
      %s24 = int_to_ptr.hbm [resolvable:$true] %s23
      %s25 = sshll.u32 [#allocation2], 4
      %s26 = int_to_ptr.vmem [resolvable:$true] %s25
      %31 = dma.hbm_to_vmem [thread:$0]  %s24, 1024, %s26, [#allocation3], 128, 128, 8
    $region9: #{tpu_custom_call.1} parent=1 // pred_fallthru
      _
    // Predicated region
    $region10: #{tpu_custom_call.1} parent=1 // pred_check
      _
    $region11: #{tpu_custom_call.1} parent=1 // pred_check_branch
      %33 = sbr.rel (0) target = $region13
    $region12: #{tpu_custom_call.1} parent=1 // pred_region
      _
    $region13: #{tpu_custom_call.1} parent=1 // pred_fallthru
      _
    // Predicated region
    $region14: #{tpu_custom_call.1} parent=1 // pred_check
      _
    $region15: #{tpu_custom_call.1} parent=1 // pred_check_branch
      %35 = sbr.rel (0) target = $region17
    $region16: #{tpu_custom_call.1} parent=1 // pred_region
      _
    $region17: #{tpu_custom_call.1} parent=1 // pred_fallthru
      _
    // Predicated region
    $region18: #{tpu_custom_call.1} parent=1 // pred_check
      _
    $region19: #{tpu_custom_call.1} parent=1 // pred_check_branch
      %37 = sbr.rel (0) target = $region21
    $region20: #{tpu_custom_call.1} parent=1 // pred_region
      %39 = vsyncadd [#allocation6], 0
      %s40 = sshll.u32 %s4, 4
      %s41 = int_to_ptr.hbm [resolvable:$true] %s40
      %s42 = sshll.u32 [#allocation5], 4
      %s43 = int_to_ptr.vmem [resolvable:$true] %s42
      %48 = dma.hbm_to_vmem [thread:$0]  %s41, 4096, %s43, [#allocation6], 128, 128, 8
    $region21: #{tpu_custom_call.1} parent=1 // pred_fallthru
      _
    // Predicated region
    $region22: #{tpu_custom_call.1} parent=1 // pred_check
      _
    $region23: #{tpu_custom_call.1} parent=1 // pred_check_branch
      %50 = sbr.rel (0) target = $region25
    $region24: #{tpu_custom_call.1} parent=1 // pred_region
      _
    $region25: #{tpu_custom_call.1} parent=1 // pred_fallthru
      _
    // Predicated region
    $region26: #{tpu_custom_call.1} parent=1 // pred_check
      _
    $region27: #{tpu_custom_call.1} parent=1 // pred_check_branch
      %52 = sbr.rel (0) target = $region29
    $region28: #{tpu_custom_call.1} parent=1 // pred_region
      %54 = dma.done [#allocation3], 1024
    $region29: #{tpu_custom_call.1} parent=1 // pred_fallthru
      _
    // Predicated region
    $region30: #{tpu_custom_call.1} parent=1 // pred_check
      _
    $region31: #{tpu_custom_call.1} parent=1 // pred_check_branch
      %56 = sbr.rel (0) target = $region33
    $region32: #{tpu_custom_call.1} parent=1 // pred_region
      %58 = dma.done [#allocation6], 4096
    $region33: #{tpu_custom_call.1} parent=1 // pred_fallthru
      _
    %p59 = scmp.eq.s32.totalorder 0, 0
    // Predicated region
    $region34: #{tpu_custom_call.1} parent=1 // pred_check
      %p60 = pneg %p59
    $region35: #{tpu_custom_call.1} parent=1 // pred_check_branch
      %62 = sbr.rel (%p60) target = $region37
    $region36: #{tpu_custom_call.1} parent=1 // pred_region
      %63 = vst [vmem:[#allocation7] sm:$0xf] 0.0
      %64 = vst [vmem:[#allocation8] sm:$0xf] 0.0
    $region37: #{tpu_custom_call.1} parent=1 // pred_fallthru
      _
    %v65 = vld [vmem:[%s5] sm:$0x3]
    %v66 = vld [vmem:[%s2] sm:$0xf]
    %v67 = vld [vmem:[%s2 + $0x4] sm:$0xf]
    %v68 = vld [vmem:[%s2 + $0x8] sm:$0xf]
    %v69 = vld [vmem:[%s2 + $0xc] sm:$0xf]
    %v70 = vld [vmem:[%s2 + $0x10] sm:$0xf]
    %v71 = vld [vmem:[%s2 + $0x14] sm:$0xf]
    %v72 = vld [vmem:[%s2 + $0x18] sm:$0xf]
    %v73 = vld [vmem:[%s2 + $0x1c] sm:$0xf]
    %v74 = vunpack.c.l.bf16 %v66
    %v75 = vunpack.c.l.bf16 %v67
    %v76 = vunpack.c.l.bf16 %v68
    %v77 = vunpack.c.l.bf16 %v69
    %v78 = vunpack.c.l.bf16 %v70
    %v79 = vunpack.c.l.bf16 %v71
    %v80 = vunpack.c.l.bf16 %v72
    %v81 = vunpack.c.l.bf16 %v73
    %v82 = vld [vmem:[%s3] sm:$0xf]
    %v83 = vld [vmem:[%s3 + $0x4] sm:$0xf]
    %v84 = vld [vmem:[%s3 + $0x8] sm:$0xf]
    %v85 = vld [vmem:[%s3 + $0xc] sm:$0xf]
    %v86 = vld [vmem:[%s3 + $0x10] sm:$0xf]
    %v87 = vld [vmem:[%s3 + $0x14] sm:$0xf]
    %v88 = vld [vmem:[%s3 + $0x18] sm:$0xf]
    %v89 = vld [vmem:[%s3 + $0x1c] sm:$0xf]
    %v90 = vunpack.c.l.bf16 %v82
    %v91 = vunpack.c.l.bf16 %v83
    %v92 = vunpack.c.l.bf16 %v84
    %v93 = vunpack.c.l.bf16 %v85
    %v94 = vunpack.c.l.bf16 %v86
    %v95 = vunpack.c.l.bf16 %v87
    %v96 = vunpack.c.l.bf16 %v88
    %v97 = vunpack.c.l.bf16 %v89
    %v98 = vld [vmem:[%s0] sm:$0xff]
    %v99 = vld [vmem:[%s0 + $0x8] sm:$0xff]
    %v100 = vld [vmem:[%s0 + $0x10] sm:$0xff]
    %v101 = vld [vmem:[%s0 + $0x18] sm:$0xff]
    %v102 = vld [vmem:[%s0 + $0x20] sm:$0xff]
    %v103 = vld [vmem:[%s0 + $0x28] sm:$0xff]
    %v104 = vld [vmem:[%s0 + $0x30] sm:$0xff]
    %v105 = vld [vmem:[%s0 + $0x38] sm:$0xff]
    %v106 = vld [vmem:[#allocation2] sm:$0xff]
    %v107 = vld [vmem:[#allocation2 + $0x8] sm:$0xff]
    %v108 = vld [vmem:[#allocation2 + $0x10] sm:$0xff]
    %v109 = vld [vmem:[#allocation2 + $0x18] sm:$0xff]
    %v110 = vld [vmem:[#allocation2 + $0x20] sm:$0xff]
    %v111 = vld [vmem:[#allocation2 + $0x28] sm:$0xff]
    %v112 = vld [vmem:[#allocation2 + $0x30] sm:$0xff]
    %v113 = vld [vmem:[#allocation2 + $0x38] sm:$0xff]
    %v114 = vld [vmem:[#allocation5] sm:$0xff]
    %v115 = vld [vmem:[#allocation5 + $0x8] sm:$0xff]
    %v116 = vld [vmem:[#allocation5 + $0x10] sm:$0xff]
    %v117 = vld [vmem:[#allocation5 + $0x18] sm:$0xff]
    %v118 = vld [vmem:[#allocation5 + $0x20] sm:$0xff]
    %v119 = vld [vmem:[#allocation5 + $0x28] sm:$0xff]
    %v120 = vld [vmem:[#allocation5 + $0x30] sm:$0xff]
    %v121 = vld [vmem:[#allocation5 + $0x38] sm:$0xff]
    %v122 = vld [vmem:[#allocation5 + $0x40] sm:$0xff]
    %v123 = vld [vmem:[#allocation5 + $0x48] sm:$0xff]
    %v124 = vld [vmem:[#allocation5 + $0x50] sm:$0xff]
    %v125 = vld [vmem:[#allocation5 + $0x58] sm:$0xff]
    %v126 = vld [vmem:[#allocation5 + $0x60] sm:$0xff]
    %v127 = vld [vmem:[#allocation5 + $0x68] sm:$0xff]
    %v128 = vld [vmem:[#allocation5 + $0x70] sm:$0xff]
    %v129 = vld [vmem:[#allocation5 + $0x78] sm:$0xff]
    %v130 = vld [vmem:[#allocation5 + $0x80] sm:$0xff]
    %v131 = vld [vmem:[#allocation5 + $0x88] sm:$0xff]
    %v132 = vld [vmem:[#allocation5 + $0x90] sm:$0xff]
    %v133 = vld [vmem:[#allocation5 + $0x98] sm:$0xff]
    %v134 = vld [vmem:[#allocation5 + $0xa0] sm:$0xff]
    %v135 = vld [vmem:[#allocation5 + $0xa8] sm:$0xff]
    %v136 = vld [vmem:[#allocation5 + $0xb0] sm:$0xff]
    %v137 = vld [vmem:[#allocation5 + $0xb8] sm:$0xff]
    %v138 = vld [vmem:[#allocation5 + $0xc0] sm:$0xff]
    %v139 = vld [vmem:[#allocation5 + $0xc8] sm:$0xff]
    %v140 = vld [vmem:[#allocation5 + $0xd0] sm:$0xff]
    %v141 = vld [vmem:[#allocation5 + $0xd8] sm:$0xff]
    %v142 = vld [vmem:[#allocation5 + $0xe0] sm:$0xff]
    %v143 = vld [vmem:[#allocation5 + $0xe8] sm:$0xff]
    %v144 = vld [vmem:[#allocation5 + $0xf0] sm:$0xff]
    %v145 = vld [vmem:[#allocation5 + $0xf8] sm:$0xff]
    %v154 = vunpack.c.l.b16 %v98
    %v155 = vunpack.c.h.b16 %v98
    %v156 = vunpack.c.l.b16 %v99
    %v157 = vunpack.c.h.b16 %v99
    %v158 = vunpack.c.l.b16 %v100
    %v159 = vunpack.c.h.b16 %v100
    %v160 = vunpack.c.l.b16 %v101
    %v161 = vunpack.c.h.b16 %v101
    %v162 = vunpack.c.l.b16 %v102
    %v163 = vunpack.c.h.b16 %v102
    %v164 = vunpack.c.l.b16 %v103
    %v165 = vunpack.c.h.b16 %v103
    %v166 = vunpack.c.l.b16 %v104
    %v167 = vunpack.c.h.b16 %v104
    %v168 = vunpack.c.l.b16 %v105
    %v169 = vunpack.c.h.b16 %v105
    %v170 = vpack.c.b16 %v156, %v154
    %v171 = vpack.c.b16 %v157, %v155
    %v172 = vpack.c.b16 %v160, %v158
    %v173 = vpack.c.b16 %v161, %v159
    %v174 = vpack.c.b16 %v164, %v162
    %v175 = vpack.c.b16 %v165, %v163
    %v176 = vpack.c.b16 %v168, %v166
    %v177 = vpack.c.b16 %v169, %v167
    %v194 = vunpack.c.l.b16 %v106
    %v195 = vunpack.c.h.b16 %v106
    %v196 = vunpack.c.l.b16 %v107
    %v197 = vunpack.c.h.b16 %v107
    %v198 = vunpack.c.l.b16 %v108
    %v199 = vunpack.c.h.b16 %v108
    %v200 = vunpack.c.l.b16 %v109
    %v201 = vunpack.c.h.b16 %v109
    %v202 = vunpack.c.l.b16 %v110
    %v203 = vunpack.c.h.b16 %v110
    %v204 = vunpack.c.l.b16 %v111
    %v205 = vunpack.c.h.b16 %v111
    %v206 = vunpack.c.l.b16 %v112
    %v207 = vunpack.c.h.b16 %v112
    %v208 = vunpack.c.l.b16 %v113
    %v209 = vunpack.c.h.b16 %v113
    %v210 = vpack.c.b16 %v196, %v194
    %v211 = vpack.c.b16 %v197, %v195
    %v212 = vpack.c.b16 %v200, %v198
    %v213 = vpack.c.b16 %v201, %v199
    %v214 = vpack.c.b16 %v204, %v202
    %v215 = vpack.c.b16 %v205, %v203
    %v216 = vpack.c.b16 %v208, %v206
    %v217 = vpack.c.b16 %v209, %v207
    %v258 = vunpack.c.l.b16 %v114
    %v259 = vunpack.c.h.b16 %v114
    %v260 = vunpack.c.l.b16 %v115
    %v261 = vunpack.c.h.b16 %v115
    %v262 = vunpack.c.l.b16 %v116
    %v263 = vunpack.c.h.b16 %v116
    %v264 = vunpack.c.l.b16 %v117
    %v265 = vunpack.c.h.b16 %v117
    %v266 = vunpack.c.l.b16 %v118
    %v267 = vunpack.c.h.b16 %v118
    %v268 = vunpack.c.l.b16 %v119
    %v269 = vunpack.c.h.b16 %v119
    %v270 = vunpack.c.l.b16 %v120
    %v271 = vunpack.c.h.b16 %v120
    %v272 = vunpack.c.l.b16 %v121
    %v273 = vunpack.c.h.b16 %v121
    %v274 = vunpack.c.l.b16 %v122
    %v275 = vunpack.c.h.b16 %v122
    %v276 = vunpack.c.l.b16 %v123
    %v277 = vunpack.c.h.b16 %v123
    %v278 = vunpack.c.l.b16 %v124
    %v279 = vunpack.c.h.b16 %v124
    %v280 = vunpack.c.l.b16 %v125
    %v281 = vunpack.c.h.b16 %v125
    %v282 = vunpack.c.l.b16 %v126
    %v283 = vunpack.c.h.b16 %v126
    %v284 = vunpack.c.l.b16 %v127
    %v285 = vunpack.c.h.b16 %v127
    %v286 = vunpack.c.l.b16 %v128
    %v287 = vunpack.c.h.b16 %v128
    %v288 = vunpack.c.l.b16 %v129
    %v289 = vunpack.c.h.b16 %v129
    %v290 = vunpack.c.l.b16 %v130
    %v291 = vunpack.c.h.b16 %v130
    %v292 = vunpack.c.l.b16 %v131
    %v293 = vunpack.c.h.b16 %v131
    %v294 = vunpack.c.l.b16 %v132
    %v295 = vunpack.c.h.b16 %v132
    %v296 = vunpack.c.l.b16 %v133
    %v297 = vunpack.c.h.b16 %v133
    %v298 = vunpack.c.l.b16 %v134
    %v299 = vunpack.c.h.b16 %v134
    %v300 = vunpack.c.l.b16 %v135
    %v301 = vunpack.c.h.b16 %v135
    %v302 = vunpack.c.l.b16 %v136
    %v303 = vunpack.c.h.b16 %v136
    %v304 = vunpack.c.l.b16 %v137
    %v305 = vunpack.c.h.b16 %v137
    %v306 = vunpack.c.l.b16 %v138
    %v307 = vunpack.c.h.b16 %v138
    %v308 = vunpack.c.l.b16 %v139
    %v309 = vunpack.c.h.b16 %v139
    %v310 = vunpack.c.l.b16 %v140
    %v311 = vunpack.c.h.b16 %v140
    %v312 = vunpack.c.l.b16 %v141
    %v313 = vunpack.c.h.b16 %v141
    %v314 = vunpack.c.l.b16 %v142
    %v315 = vunpack.c.h.b16 %v142
    %v316 = vunpack.c.l.b16 %v143
    %v317 = vunpack.c.h.b16 %v143
    %v318 = vunpack.c.l.b16 %v144
    %v319 = vunpack.c.h.b16 %v144
    %v320 = vunpack.c.l.b16 %v145
    %v321 = vunpack.c.h.b16 %v145
    %v322 = vpack.c.b16 %v260, %v258
    %v323 = vpack.c.b16 %v261, %v259
    %v324 = vpack.c.b16 %v264, %v262
    %v325 = vpack.c.b16 %v265, %v263
    %v326 = vpack.c.b16 %v268, %v266
    %v327 = vpack.c.b16 %v269, %v267
    %v328 = vpack.c.b16 %v272, %v270
    %v329 = vpack.c.b16 %v273, %v271
    %v330 = vpack.c.b16 %v276, %v274
    %v331 = vpack.c.b16 %v277, %v275
    %v332 = vpack.c.b16 %v280, %v278
    %v333 = vpack.c.b16 %v281, %v279
    %v334 = vpack.c.b16 %v284, %v282
    %v335 = vpack.c.b16 %v285, %v283
    %v336 = vpack.c.b16 %v288, %v286
    %v337 = vpack.c.b16 %v289, %v287
    %v338 = vpack.c.b16 %v292, %v290
    %v339 = vpack.c.b16 %v293, %v291
    %v340 = vpack.c.b16 %v296, %v294
    %v341 = vpack.c.b16 %v297, %v295
    %v342 = vpack.c.b16 %v300, %v298
    %v343 = vpack.c.b16 %v301, %v299
    %v344 = vpack.c.b16 %v304, %v302
    %v345 = vpack.c.b16 %v305, %v303
    %v346 = vpack.c.b16 %v308, %v306
    %v347 = vpack.c.b16 %v309, %v307
    %v348 = vpack.c.b16 %v312, %v310
    %v349 = vpack.c.b16 %v313, %v311
    %v350 = vpack.c.b16 %v316, %v314
    %v351 = vpack.c.b16 %v317, %v315
    %v352 = vpack.c.b16 %v320, %v318
    %v353 = vpack.c.b16 %v321, %v319
    %386 = vmatpush.bf16.msra.mxu0 %v336
    %387 = vmatpush.bf16.msra.mxu0 %v334
    %388 = vmatpush.bf16.msra.mxu0 %v332
    %389 = vmatpush.bf16.msra.mxu0 %v330
    %390 = vmatpush.bf16.msra.mxu0 %v328
    %391 = vmatpush.bf16.msra.mxu0 %v326
    %392 = vmatpush.bf16.msra.mxu0 %v324
    %393 = vmatpush.bf16.msra.mxu0 %v322
    %394 = vmatmul.bf16.gmra.mxu0 %v170
    %v395 = vpop.f32.mrf.mxu0
    %v396 = vadd.f32 0.0, %v395
    %v397 = vpop.f32.mrf.mxu0
    %v398 = vadd.f32 0.0, %v397
    %399 = vmatmul.bf16.gmra.mxu0 %v172
    %v400 = vpop.f32.mrf.mxu0
    %v401 = vadd.f32 0.0, %v400
    %v402 = vpop.f32.mrf.mxu0
    %v403 = vadd.f32 0.0, %v402
    %404 = vmatmul.bf16.gmra.mxu0 %v174
    %v405 = vpop.f32.mrf.mxu0
    %v406 = vadd.f32 0.0, %v405
    %v407 = vpop.f32.mrf.mxu0
    %v408 = vadd.f32 0.0, %v407
    %409 = vmatmul.bf16.gmra.mxu0 %v176
    %v410 = vpop.f32.mrf.mxu0
    %v411 = vadd.f32 0.0, %v410
    %v412 = vpop.f32.mrf.mxu0
    %v413 = vadd.f32 0.0, %v412
    %414 = vmatmul.bf16.gmra.mxu0 %v210
    %v415 = vpop.f32.mrf.mxu0
    %v416 = vadd.f32 0.0, %v415
    %v417 = vpop.f32.mrf.mxu0
    %v418 = vadd.f32 0.0, %v417
    %419 = vmatmul.bf16.gmra.mxu0 %v212
    %v420 = vpop.f32.mrf.mxu0
    %v421 = vadd.f32 0.0, %v420
    %v422 = vpop.f32.mrf.mxu0
    %v423 = vadd.f32 0.0, %v422
    %424 = vmatmul.bf16.gmra.mxu0 %v214
    %v425 = vpop.f32.mrf.mxu0
    %v426 = vadd.f32 0.0, %v425
    %v427 = vpop.f32.mrf.mxu0
    %v428 = vadd.f32 0.0, %v427
    %429 = vmatmul.bf16.gmra.mxu0 %v216
    %v430 = vpop.f32.mrf.mxu0
    %v431 = vadd.f32 0.0, %v430
    %v432 = vpop.f32.mrf.mxu0
    %v433 = vadd.f32 0.0, %v432
    %434 = vdwg.mxu0
    %435 = vmatpush.bf16.msra.mxu0 %v352
    %436 = vmatpush.bf16.msra.mxu0 %v350
    %437 = vmatpush.bf16.msra.mxu0 %v348
    %438 = vmatpush.bf16.msra.mxu0 %v346
    %439 = vmatpush.bf16.msra.mxu0 %v344
    %440 = vmatpush.bf16.msra.mxu0 %v342
    %441 = vmatpush.bf16.msra.mxu0 %v340
    %442 = vmatpush.bf16.msra.mxu0 %v338
    %443 = vmatmul.bf16.gmra.mxu0 %v171
    %v444 = vpop.f32.mrf.mxu0
    %v445 = vadd.f32 %v396, %v444
    %v446 = vpop.f32.mrf.mxu0
    %v447 = vadd.f32 %v398, %v446
    %448 = vmatmul.bf16.gmra.mxu0 %v173
    %v449 = vpop.f32.mrf.mxu0
    %v450 = vadd.f32 %v401, %v449
    %v451 = vpop.f32.mrf.mxu0
    %v452 = vadd.f32 %v403, %v451
    %453 = vmatmul.bf16.gmra.mxu0 %v175
    %v454 = vpop.f32.mrf.mxu0
    %v455 = vadd.f32 %v406, %v454
    %v456 = vpop.f32.mrf.mxu0
    %v457 = vadd.f32 %v408, %v456
    %458 = vmatmul.bf16.gmra.mxu0 %v177
    %v459 = vpop.f32.mrf.mxu0
    %v460 = vadd.f32 %v411, %v459
    %v461 = vpop.f32.mrf.mxu0
    %v462 = vadd.f32 %v413, %v461
    %463 = vmatmul.bf16.gmra.mxu0 %v211
    %v464 = vpop.f32.mrf.mxu0
    %v465 = vadd.f32 %v416, %v464
    %v466 = vpop.f32.mrf.mxu0
    %v467 = vadd.f32 %v418, %v466
    %468 = vmatmul.bf16.gmra.mxu0 %v213
    %v469 = vpop.f32.mrf.mxu0
    %v470 = vadd.f32 %v421, %v469
    %v471 = vpop.f32.mrf.mxu0
    %v472 = vadd.f32 %v423, %v471
    %473 = vmatmul.bf16.gmra.mxu0 %v215
    %v474 = vpop.f32.mrf.mxu0
    %v475 = vadd.f32 %v426, %v474
    %v476 = vpop.f32.mrf.mxu0
    %v477 = vadd.f32 %v428, %v476
    %478 = vmatmul.bf16.gmra.mxu0 %v217
    %v479 = vpop.f32.mrf.mxu0
    %v480 = vadd.f32 %v431, %v479
    %v481 = vpop.f32.mrf.mxu0
    %v482 = vadd.f32 %v433, %v481
    %483 = vdwg.mxu0
    %484 = vmatpush.bf16.msra.mxu0 %v337
    %485 = vmatpush.bf16.msra.mxu0 %v335
    %486 = vmatpush.bf16.msra.mxu0 %v333
    %487 = vmatpush.bf16.msra.mxu0 %v331
    %488 = vmatpush.bf16.msra.mxu0 %v329
    %489 = vmatpush.bf16.msra.mxu0 %v327
    %490 = vmatpush.bf16.msra.mxu0 %v325
    %491 = vmatpush.bf16.msra.mxu0 %v323
    %492 = vmatmul.bf16.gmra.mxu0 %v170
    %v493 = vpop.f32.mrf.mxu0
    %v494 = vadd.f32 0.0, %v493
    %v495 = vpop.f32.mrf.mxu0
    %v496 = vadd.f32 0.0, %v495
    %497 = vmatmul.bf16.gmra.mxu0 %v172
    %v498 = vpop.f32.mrf.mxu0
    %v499 = vadd.f32 0.0, %v498
    %v500 = vpop.f32.mrf.mxu0
    %v501 = vadd.f32 0.0, %v500
    %502 = vmatmul.bf16.gmra.mxu0 %v174
    %v503 = vpop.f32.mrf.mxu0
    %v504 = vadd.f32 0.0, %v503
    %v505 = vpop.f32.mrf.mxu0
    %v506 = vadd.f32 0.0, %v505
    %507 = vmatmul.bf16.gmra.mxu0 %v176
    %v508 = vpop.f32.mrf.mxu0
    %v509 = vadd.f32 0.0, %v508
    %v510 = vpop.f32.mrf.mxu0
    %v511 = vadd.f32 0.0, %v510
    %512 = vmatmul.bf16.gmra.mxu0 %v210
    %v513 = vpop.f32.mrf.mxu0
    %v514 = vadd.f32 0.0, %v513
    %v515 = vpop.f32.mrf.mxu0
    %v516 = vadd.f32 0.0, %v515
    %517 = vmatmul.bf16.gmra.mxu0 %v212
    %v518 = vpop.f32.mrf.mxu0
    %v519 = vadd.f32 0.0, %v518
    %v520 = vpop.f32.mrf.mxu0
    %v521 = vadd.f32 0.0, %v520
    %522 = vmatmul.bf16.gmra.mxu0 %v214
    %v523 = vpop.f32.mrf.mxu0
    %v524 = vadd.f32 0.0, %v523
    %v525 = vpop.f32.mrf.mxu0
    %v526 = vadd.f32 0.0, %v525
    %527 = vmatmul.bf16.gmra.mxu0 %v216
    %v528 = vpop.f32.mrf.mxu0
    %v529 = vadd.f32 0.0, %v528
    %v530 = vpop.f32.mrf.mxu0
    %v531 = vadd.f32 0.0, %v530
    %532 = vdwg.mxu0
    %533 = vmatpush.bf16.msra.mxu0 %v353
    %534 = vmatpush.bf16.msra.mxu0 %v351
    %535 = vmatpush.bf16.msra.mxu0 %v349
    %536 = vmatpush.bf16.msra.mxu0 %v347
    %537 = vmatpush.bf16.msra.mxu0 %v345
    %538 = vmatpush.bf16.msra.mxu0 %v343
    %539 = vmatpush.bf16.msra.mxu0 %v341
    %540 = vmatpush.bf16.msra.mxu0 %v339
    %541 = vmatmul.bf16.gmra.mxu0 %v171
    %v542 = vpop.f32.mrf.mxu0
    %v543 = vadd.f32 %v494, %v542
    %v544 = vpop.f32.mrf.mxu0
    %v545 = vadd.f32 %v496, %v544
    %546 = vmatmul.bf16.gmra.mxu0 %v173
    %v547 = vpop.f32.mrf.mxu0
    %v548 = vadd.f32 %v499, %v547
    %v549 = vpop.f32.mrf.mxu0
    %v550 = vadd.f32 %v501, %v549
    %551 = vmatmul.bf16.gmra.mxu0 %v175
    %v552 = vpop.f32.mrf.mxu0
    %v553 = vadd.f32 %v504, %v552
    %v554 = vpop.f32.mrf.mxu0
    %v555 = vadd.f32 %v506, %v554
    %556 = vmatmul.bf16.gmra.mxu0 %v177
    %v557 = vpop.f32.mrf.mxu0
    %v558 = vadd.f32 %v509, %v557
    %v559 = vpop.f32.mrf.mxu0
    %v560 = vadd.f32 %v511, %v559
    %561 = vmatmul.bf16.gmra.mxu0 %v211
    %v562 = vpop.f32.mrf.mxu0
    %v563 = vadd.f32 %v514, %v562
    %v564 = vpop.f32.mrf.mxu0
    %v565 = vadd.f32 %v516, %v564
    %566 = vmatmul.bf16.gmra.mxu0 %v213
    %v567 = vpop.f32.mrf.mxu0
    %v568 = vadd.f32 %v519, %v567
    %v569 = vpop.f32.mrf.mxu0
    %v570 = vadd.f32 %v521, %v569
    %571 = vmatmul.bf16.gmra.mxu0 %v215
    %v572 = vpop.f32.mrf.mxu0
    %v573 = vadd.f32 %v524, %v572
    %v574 = vpop.f32.mrf.mxu0
    %v575 = vadd.f32 %v526, %v574
    %576 = vmatmul.bf16.gmra.mxu0 %v217
    %v577 = vpop.f32.mrf.mxu0
    %v578 = vadd.f32 %v529, %v577
    %v579 = vpop.f32.mrf.mxu0
    %v580 = vadd.f32 %v531, %v579
    %581 = vdwg.mxu0
    %v583 = vperm.slane %v65, 0
    %v584 = vperm.slane %v65, 1
    %v587 = vadd.f32 %v445, %v583
    %v588 = vadd.f32 %v543, %v584
    %v589 = vadd.f32 %v447, %v583
    %v590 = vadd.f32 %v545, %v584
    %v591 = vadd.f32 %v450, %v583
    %v592 = vadd.f32 %v548, %v584
    %v593 = vadd.f32 %v452, %v583
    %v594 = vadd.f32 %v550, %v584
    %v595 = vadd.f32 %v455, %v583
    %v596 = vadd.f32 %v553, %v584
    %v597 = vadd.f32 %v457, %v583
    %v598 = vadd.f32 %v555, %v584
    %v599 = vadd.f32 %v460, %v583
    %v600 = vadd.f32 %v558, %v584
    %v601 = vadd.f32 %v462, %v583
    %v602 = vadd.f32 %v560, %v584
    %v603 = vmax.f32 %v587, 0.0
    %v604 = vmax.f32 %v588, 0.0
    %v605 = vmax.f32 %v589, 0.0
    %v606 = vmax.f32 %v590, 0.0
    %v607 = vmax.f32 %v591, 0.0
    %v608 = vmax.f32 %v592, 0.0
    %v609 = vmax.f32 %v593, 0.0
    %v610 = vmax.f32 %v594, 0.0
    %v611 = vmax.f32 %v595, 0.0
    %v612 = vmax.f32 %v596, 0.0
    %v613 = vmax.f32 %v597, 0.0
    %v614 = vmax.f32 %v598, 0.0
    %v615 = vmax.f32 %v599, 0.0
    %v616 = vmax.f32 %v600, 0.0
    %v617 = vmax.f32 %v601, 0.0
    %v618 = vmax.f32 %v602, 0.0
    %v619 = vmul.f32 %v465, 0.0625
    %v620 = vmul.f32 %v563, 0.0625
    %v621 = vmul.f32 %v467, 0.0625
    %v622 = vmul.f32 %v565, 0.0625
    %v623 = vmul.f32 %v470, 0.0625
    %v624 = vmul.f32 %v568, 0.0625
    %v625 = vmul.f32 %v472, 0.0625
    %v626 = vmul.f32 %v570, 0.0625
    %v627 = vmul.f32 %v475, 0.0625
    %v628 = vmul.f32 %v573, 0.0625
    %v629 = vmul.f32 %v477, 0.0625
    %v630 = vmul.f32 %v575, 0.0625
    %v631 = vmul.f32 %v480, 0.0625
    %v632 = vmul.f32 %v578, 0.0625
    %v633 = vmul.f32 %v482, 0.0625
    %v634 = vmul.f32 %v580, 0.0625
    %v635 = vadd.f32 %v619, %v583
    %v636 = vadd.f32 %v620, %v584
    %v637 = vadd.f32 %v621, %v583
    %v638 = vadd.f32 %v622, %v584
    %v639 = vadd.f32 %v623, %v583
    %v640 = vadd.f32 %v624, %v584
    %v641 = vadd.f32 %v625, %v583
    %v642 = vadd.f32 %v626, %v584
    %v643 = vadd.f32 %v627, %v583
    %v644 = vadd.f32 %v628, %v584
    %v645 = vadd.f32 %v629, %v583
    %v646 = vadd.f32 %v630, %v584
    %v647 = vadd.f32 %v631, %v583
    %v648 = vadd.f32 %v632, %v584
    %v649 = vadd.f32 %v633, %v583
    %v650 = vadd.f32 %v634, %v584
    %v651 = vmax.f32 %v635, 0.0
    %v652 = vmax.f32 %v636, 0.0
    %v653 = vmax.f32 %v637, 0.0
    %v654 = vmax.f32 %v638, 0.0
    %v655 = vmax.f32 %v639, 0.0
    %v656 = vmax.f32 %v640, 0.0
    %v657 = vmax.f32 %v641, 0.0
    %v658 = vmax.f32 %v642, 0.0
    %v659 = vmax.f32 %v643, 0.0
    %v660 = vmax.f32 %v644, 0.0
    %v661 = vmax.f32 %v645, 0.0
    %v662 = vmax.f32 %v646, 0.0
    %v663 = vmax.f32 %v647, 0.0
    %v664 = vmax.f32 %v648, 0.0
    %v665 = vmax.f32 %v649, 0.0
    %v666 = vmax.f32 %v650, 0.0
    %v667 = vld [vmem:[#allocation7] sm:$0xf]
    %669 = vset.pattern.permute.xlu0 0
    %670 = vperm.xlu0 %669, %v74
    %v671 = vpop.permute.xlu0 %670
    %674 = vset.pattern.permute.xlu0 0
    %675 = vperm.xlu0 %674, %v75
    %v676 = vpop.permute.xlu0 %675
    %679 = vset.pattern.permute.xlu0 0
    %680 = vperm.xlu0 %679, %v76
    %v681 = vpop.permute.xlu0 %680
    %684 = vset.pattern.permute.xlu0 0
    %685 = vperm.xlu0 %684, %v77
    %v686 = vpop.permute.xlu0 %685
    %689 = vset.pattern.permute.xlu0 0
    %690 = vperm.xlu0 %689, %v78
    %v691 = vpop.permute.xlu0 %690
    %694 = vset.pattern.permute.xlu0 0
    %695 = vperm.xlu0 %694, %v79
    %v696 = vpop.permute.xlu0 %695
    %699 = vset.pattern.permute.xlu0 0
    %700 = vperm.xlu0 %699, %v80
    %v701 = vpop.permute.xlu0 %700
    %704 = vset.pattern.permute.xlu0 0
    %705 = vperm.xlu0 %704, %v81
    %v706 = vpop.permute.xlu0 %705
    %v708 = vmul.f32 %v603, %v671
    %v709 = vmul.f32 %v604, %v671
    %v710 = vmul.f32 %v605, %v676
    %v711 = vmul.f32 %v606, %v676
    %v712 = vmul.f32 %v607, %v681
    %v713 = vmul.f32 %v608, %v681
    %v714 = vmul.f32 %v609, %v686
    %v715 = vmul.f32 %v610, %v686
    %v716 = vmul.f32 %v611, %v691
    %v717 = vmul.f32 %v612, %v691
    %v718 = vmul.f32 %v613, %v696
    %v719 = vmul.f32 %v614, %v696
    %v720 = vmul.f32 %v615, %v701
    %v721 = vmul.f32 %v616, %v701
    %v722 = vmul.f32 %v617, %v706
    %v723 = vmul.f32 %v618, %v706
    %v724 = vadd.f32 %v708, %v710
    %v725 = vadd.f32 %v724, %v712
    %v726 = vadd.f32 %v725, %v714
    %v727 = vrot.slane %v726, 4
    %v728 = vadd.f32 %v726, %v727
    %v729 = vrot.slane %v728, 2
    %v730 = vadd.f32 %v728, %v729
    %v731 = vrot.slane %v730, 1
    %v732 = vadd.f32 %v730, %v731
    %v733 = vadd.f32 %v709, %v711
    %v734 = vadd.f32 %v733, %v713
    %v735 = vadd.f32 %v734, %v715
    %v736 = vrot.slane %v735, 4
    %v737 = vadd.f32 %v735, %v736
    %v738 = vrot.slane %v737, 2
    %v739 = vadd.f32 %v737, %v738
    %v740 = vrot.slane %v739, 1
    %v741 = vadd.f32 %v739, %v740
    %v742 = vadd.f32 %v716, %v718
    %v743 = vadd.f32 %v742, %v720
    %v744 = vadd.f32 %v743, %v722
    %v745 = vrot.slane %v744, 4
    %v746 = vadd.f32 %v744, %v745
    %v747 = vrot.slane %v746, 2
    %v748 = vadd.f32 %v746, %v747
    %v749 = vrot.slane %v748, 1
    %v750 = vadd.f32 %v748, %v749
    %v751 = vadd.f32 %v717, %v719
    %v752 = vadd.f32 %v751, %v721
    %v753 = vadd.f32 %v752, %v723
    %v754 = vrot.slane %v753, 4
    %v755 = vadd.f32 %v753, %v754
    %v756 = vrot.slane %v755, 2
    %v757 = vadd.f32 %v755, %v756
    %v758 = vrot.slane %v757, 1
    %v759 = vadd.f32 %v757, %v758
    %v764 = vrot.slane %v741, 6
    %v765 = vrot.slane %v759, 6
    %vm766 = vcmask 1041408
    %v767 = vsel %vm766, %v732, %v764
    %v768 = vsel %vm766, %v750, %v765
    %vm769 = vcmask 1044484
    %v770 = vsel %vm769, %v767, %v767
    %vm771 = vcmask 1046534
    %v772 = vsel %vm771, %v767, %v770
    %v773 = vrot.slane %v768, 7
    %vm774 = vcmask 1041409
    %v775 = vsel %vm774, %v773, %v772
    %vm776 = vcmask 1043459
    %v777 = vsel %vm776, %v773, %v775
    %vm778 = vcmask 1045509
    %v779 = vsel %vm778, %v773, %v777
    %vm780 = vcmask 1047559
    %v781 = vsel %vm780, %v773, %v779
    %v783 = vadd.f32 %v667, %v781
    %784 = vst [vmem:[#allocation7] sm:$0xf] %v783
    %v785 = vld [vmem:[#allocation8] sm:$0xf]
    %787 = vset.pattern.permute.xlu0 0
    %788 = vperm.xlu0 %787, %v90
    %v789 = vpop.permute.xlu0 %788
    %792 = vset.pattern.permute.xlu0 0
    %793 = vperm.xlu0 %792, %v91
    %v794 = vpop.permute.xlu0 %793
    %797 = vset.pattern.permute.xlu0 0
    %798 = vperm.xlu0 %797, %v92
    %v799 = vpop.permute.xlu0 %798
    %802 = vset.pattern.permute.xlu0 0
    %803 = vperm.xlu0 %802, %v93
    %v804 = vpop.permute.xlu0 %803
    %807 = vset.pattern.permute.xlu0 0
    %808 = vperm.xlu0 %807, %v94
    %v809 = vpop.permute.xlu0 %808
    %812 = vset.pattern.permute.xlu0 0
    %813 = vperm.xlu0 %812, %v95
    %v814 = vpop.permute.xlu0 %813
    %817 = vset.pattern.permute.xlu0 0
    %818 = vperm.xlu0 %817, %v96
    %v819 = vpop.permute.xlu0 %818
    %822 = vset.pattern.permute.xlu0 0
    %823 = vperm.xlu0 %822, %v97
    %v824 = vpop.permute.xlu0 %823
    %v826 = vmul.f32 %v651, %v789
    %v827 = vmul.f32 %v652, %v789
    %v828 = vmul.f32 %v653, %v794
    %v829 = vmul.f32 %v654, %v794
    %v830 = vmul.f32 %v655, %v799
    %v831 = vmul.f32 %v656, %v799
    %v832 = vmul.f32 %v657, %v804
    %v833 = vmul.f32 %v658, %v804
    %v834 = vmul.f32 %v659, %v809
    %v835 = vmul.f32 %v660, %v809
    %v836 = vmul.f32 %v661, %v814
    %v837 = vmul.f32 %v662, %v814
    %v838 = vmul.f32 %v663, %v819
    %v839 = vmul.f32 %v664, %v819
    %v840 = vmul.f32 %v665, %v824
    %v841 = vmul.f32 %v666, %v824
    %v842 = vadd.f32 %v826, %v828
    %v843 = vadd.f32 %v842, %v830
    %v844 = vadd.f32 %v843, %v832
    %v845 = vrot.slane %v844, 4
    %v846 = vadd.f32 %v844, %v845
    %v847 = vrot.slane %v846, 2
    %v848 = vadd.f32 %v846, %v847
    %v849 = vrot.slane %v848, 1
    %v850 = vadd.f32 %v848, %v849
    %v851 = vadd.f32 %v827, %v829
    %v852 = vadd.f32 %v851, %v831
    %v853 = vadd.f32 %v852, %v833
    %v854 = vrot.slane %v853, 4
    %v855 = vadd.f32 %v853, %v854
    %v856 = vrot.slane %v855, 2
    %v857 = vadd.f32 %v855, %v856
    %v858 = vrot.slane %v857, 1
    %v859 = vadd.f32 %v857, %v858
    %v860 = vadd.f32 %v834, %v836
    %v861 = vadd.f32 %v860, %v838
    %v862 = vadd.f32 %v861, %v840
    %v863 = vrot.slane %v862, 4
    %v864 = vadd.f32 %v862, %v863
    %v865 = vrot.slane %v864, 2
    %v866 = vadd.f32 %v864, %v865
    %v867 = vrot.slane %v866, 1
    %v868 = vadd.f32 %v866, %v867
    %v869 = vadd.f32 %v835, %v837
    %v870 = vadd.f32 %v869, %v839
    %v871 = vadd.f32 %v870, %v841
    %v872 = vrot.slane %v871, 4
    %v873 = vadd.f32 %v871, %v872
    %v874 = vrot.slane %v873, 2
    %v875 = vadd.f32 %v873, %v874
    %v876 = vrot.slane %v875, 1
    %v877 = vadd.f32 %v875, %v876
    %v882 = vrot.slane %v859, 6
    %v883 = vrot.slane %v877, 6
    %v884 = vsel %vm766, %v850, %v882
    %v885 = vsel %vm766, %v868, %v883
    %v886 = vsel %vm769, %v884, %v884
    %v887 = vsel %vm771, %v884, %v886
    %v888 = vrot.slane %v885, 7
    %v889 = vsel %vm774, %v888, %v887
    %v890 = vsel %vm776, %v888, %v889
    %v891 = vsel %vm778, %v888, %v890
    %v892 = vsel %vm780, %v888, %v891
    %v894 = vadd.f32 %v785, %v892
    %895 = vst [vmem:[#allocation8] sm:$0xf] %v894
    // Predicated region
    $region38: #{tpu_custom_call.1} parent=1 // pred_check
      _
    $region39: #{tpu_custom_call.1} parent=1 // pred_check_branch
      %897 = sbr.rel (0) target = $region41
    $region40: #{tpu_custom_call.1} parent=1 // pred_region
      %899 = vsyncadd [#allocation4], 0
      %s901 = sshll.u32 [#allocation7], 4
      %s902 = int_to_ptr.vmem [resolvable:$true] %s901
      %s903 = sshll.u32 %s6, 4
      %s904 = int_to_ptr.hbm [resolvable:$true] %s903
      %906 = dma.vmem_to_hbm [thread:$0]  %s902, 64, %s904, [#allocation4]
    $region41: #{tpu_custom_call.1} parent=1 // pred_fallthru
      _
    // Predicated region
    $region42: #{tpu_custom_call.1} parent=1 // pred_check
      _
    $region43: #{tpu_custom_call.1} parent=1 // pred_check_branch
      %908 = sbr.rel (0) target = $region45
    $region44: #{tpu_custom_call.1} parent=1 // pred_region
      %910 = vsyncadd [#allocation9], 0
      %s912 = sshll.u32 [#allocation8], 4
      %s913 = int_to_ptr.vmem [resolvable:$true] %s912
      %s914 = sshll.u32 %s7, 4
      %s915 = int_to_ptr.hbm [resolvable:$true] %s914
      %917 = dma.vmem_to_hbm [thread:$0]  %s913, 64, %s915, [#allocation9]
    $region45: #{tpu_custom_call.1} parent=1 // pred_fallthru
      _
    // Predicated region
    $region46: #{tpu_custom_call.1} parent=1 // pred_check
      _
    $region47: #{tpu_custom_call.1} parent=1 // pred_check_branch
      %919 = sbr.rel (0) target = $region49
    $region48: #{tpu_custom_call.1} parent=1 // pred_region
      %921 = dma.done [#allocation4], 64
    $region49: #{tpu_custom_call.1} parent=1 // pred_fallthru
      _
    // Predicated region
    $region50: #{tpu_custom_call.1} parent=1 // pred_check
      _
    $region51: #{tpu_custom_call.1} parent=1 // pred_check_branch
      %923 = sbr.rel (0) target = $region53
    $region52: #{tpu_custom_call.1} parent=1 // pred_region
      %925 = dma.done [#allocation9], 64
    $region53: #{tpu_custom_call.1} parent=1 // pred_fallthru
      _
    %926 = vsyncpa [#allocation3], 1
    %927 = vsyncpa [#allocation6], 1
    %928 = vsyncpa [#allocation4], 1
    %929 = vsyncpa [#allocation9], 1

</llo_original>
